<compile_context>
chip_gen: v7x
topology: tpu7x:2x2x1
jax: 0.10.0
libtpu: 0.0.40
codegen_flags: <defaults>
</compile_context>

<pallas_src>
import functools

import jax
import jax.numpy as jnp
from jax.experimental import pallas as pl
from jax.experimental.pallas import tpu as pltpu


# ----------------------------- Pallas kernel --------------------------------
def _complex_conv_mm_kernel(p_ref, w_ref, b_ref, o_ref, acc_ref):
    """One (M, N) output tile, accumulated over the K (reduction) grid axis.

    p_ref  : [TM, TK]  bf16  im2col patches, features ordered (C, kh, kw, re/im)
    w_ref  : [TK, TN]  bf16  interleaved complex weight block
    b_ref  : [1, TN]   f32   combined bias [b_re - b_im | b_re + b_im]
    o_ref  : [TM, TN]  out   [real | imag] outputs
    acc_ref: [TM, TN]  f32   VMEM accumulator scratch
    """
    k = pl.program_id(2)

    @pl.when(k == 0)
    def _():
        acc_ref[...] = jnp.zeros_like(acc_ref)

    acc_ref[...] += jnp.dot(p_ref[...], w_ref[...],
                            preferred_element_type=jnp.float32)

    @pl.when(k == pl.num_programs(2) - 1)
    def _():
        o_ref[...] = (acc_ref[...] + b_ref[...]).astype(o_ref.dtype)


# ------------------------------ host-side glue ------------------------------
_VMEM_DATA_BUDGET = 40 * 1024 * 1024   # data tiles; leaves headroom on v7x (64 MiB/TC)
_VMEM_LIMIT_CAP = 48 * 1024 * 1024     # never request v7x's entire physical VMEM
_K_SINGLE_TILE_MAX = 1024              # keep the contraction un-padded up to this


def _round_up(x, m):
    return ((x + m - 1) // m) * m


def _largest_tile(total, cap):
    """Largest multiple-of-128 divisor of `total` that is <= cap (or `total`
    itself if it already fits). `total` is assumed to be a multiple of 128
    whenever total > cap."""
    if total <= cap:
        return total
    t = (cap // 128) * 128
    while total % t:
        t -= 128
    return t


def _pick_tm(M, tm_req):
    """M tile: multiple of 128, >= 2 tiles when possible, prefer an even tile
    count so v7x's two TensorCores split the parallel M axis evenly."""
    tm = max(128, min(1024, (int(tm_req) // 128) * 128))
    tm = min(tm, _round_up(max(M, 1), 128))
    while tm > 128 and pl.cdiv(M, tm) < 2:
        tm = max(128, ((tm // 2) // 128) * 128)
    if tm > 128 and pl.cdiv(M, tm) % 2 == 1:
        tm_half = max(128, ((tm // 2) // 128) * 128)
        if pl.cdiv(M, tm_half) % 2 == 0:
            tm = tm_half
    return tm


def _vmem_need(tm, tk, tn):
    """Rough per-step VMEM footprint (default double-buffering, f32 out worst case)."""
    return (2 * tm * tk * 2        # bf16 patch tiles
            + 2 * tk * tn * 2      # bf16 weight tiles
            + 2 * tn * 4           # bias tiles
            + 2 * tm * tn * 4      # output tiles
            + tm * tn * 4)         # f32 accumulator scratch


def _im2col_complex(x, kh, kw, stride, padding, dilation):
    """x: [B, C, H, W, 2] -> patches [B, Ho, Wo, C*kh*kw*2].

    Feature ordering is (C, kh, kw, complex) with the complex (re/im) index
    fastest, i.e. a single im2col pass over the complex input."""
    B, C, H, W, _ = x.shape
    xp = jnp.pad(x, ((0, 0), (0, 0), (padding, padding), (padding, padding), (0, 0)))
    Hp, Wp = xp.shape[2], xp.shape[3]
    H_out = (Hp - dilation * (kh - 1) - 1) // stride + 1
    W_out = (Wp - dilation * (kw - 1) - 1) // stride + 1

    cols = []
    for i in range(kh):
        for j in range(kw):
            r0 = i * dilation
            c0 = j * dilation
            cols.append(xp[:, :,
                           r0:r0 + stride * (H_out - 1) + 1:stride,
                           c0:c0 + stride * (W_out - 1) + 1:stride, :])  # [B,C,Ho,Wo,2]
    p = jnp.stack(cols, axis=2)                       # [B, C, kh*kw, Ho, Wo, 2]
    p = p.transpose(0, 3, 4, 1, 2, 5)                 # [B, Ho, Wo, C, kh*kw, 2]
    p = p.reshape(B, H_out, W_out, C * kh * kw * 2)
    return p, H_out, W_out


@functools.partial(jax.jit,
                   static_argnames=("stride", "padding", "dilation", "tm", "out_dtype"))
def complex_conv2d(x, w_re, b_re, w_im, b_im, *, stride=1, padding=0, dilation=1,
                   tm=512, out_dtype=jnp.float32):
    """Complex Conv2d matching PyTorch ComplexConv2d.forward (groups=1).

    x          : [B, C_in, H, W, 2]  float32   (last dim = (real, imag))
    w_re, w_im : [C_out, C_in, kh, kw]
    b_re, b_im : [C_out]
    returns    : [B, C_out, H_out, W_out, 2]  out_dtype (default float32)
    """
    B, C_in, H, W, _ = x.shape
    C_out, _, kh, kw = w_re.shape
    K = C_in * kh * kw
    N = C_out
    Kraw = 2 * K
    N2 = _round_up(2 * N, 128)          # lane-dense output width

    # Contraction-dim layout: un-padded (just 16-aligned for bf16 packing) when
    # it fits a single K tile, else 128-aligned and grid-tiled over K.
    if Kraw <= _K_SINGLE_TILE_MAX:
        K2 = _round_up(Kraw, 16)
        tk = K2
    else:
        K2 = _round_up(Kraw, 128)
        tk = _largest_tile(K2, 1024)
    tn = _largest_tile(N2, 512)

    # ---- patches: ONE im2col pass over the complex input, bf16, no re/im concat.
    x_bf = x.astype(jnp.bfloat16)
    patches, H_out, W_out = _im2col_complex(x_bf, kh, kw, stride, padding, dilation)
    M = B * H_out * W_out

    # ---- VMEM-aware tile selection (v7x-safe budget).
    tm_eff = _pick_tm(M, tm)
    while _vmem_need(tm_eff, tk, tn) > _VMEM_DATA_BUDGET:
        if tm_eff > 128:
            tm_eff = max(128, ((tm_eff // 2) // 128) * 128)
        elif tn > 128:
            tn = _largest_tile(N2, tn - 128)
        elif tk > 128 and K2 % 128 == 0:
            tk = _largest_tile(K2, tk - 128)
        else:
            break
    M_pad = _round_up(M, tm_eff)

    patches = patches.reshape(M, Kraw)
    patches = jnp.pad(patches, ((0, M_pad - M), (0, K2 - Kraw)))

    # ---- weights: rows interleaved (k, re/im) to match the patch feature order.
    #      row (k, re) = [ w_re[:,k] |  w_im[:,k] ]
    #      row (k, im) = [-w_im[:,k] |  w_re[:,k] ]
    w_re2d = w_re.reshape(C_out, K).T.astype(jnp.float32)   # [K, N]
    w_im2d = w_im.reshape(C_out, K).T.astype(jnp.float32)   # [K, N]
    w_top = jnp.concatenate([w_re2d, w_im2d], axis=1)       # [K, 2N]
    w_bot = jnp.concatenate([-w_im2d, w_re2d], axis=1)      # [K, 2N]
    w_block = jnp.stack([w_top, w_bot], axis=1).reshape(Kraw, 2 * N)
    w_block = jnp.pad(w_block, ((0, K2 - Kraw), (0, N2 - 2 * N))).astype(jnp.bfloat16)

    # ---- combined bias: [b_re - b_im | b_re + b_im], f32, added post-matmul.
    b_cat = jnp.concatenate([b_re - b_im, b_re + b_im]).astype(jnp.float32)
    b_cat = jnp.pad(b_cat, (0, N2 - 2 * N)).reshape(1, N2)

    grid = (M_pad // tm_eff, N2 // tn, K2 // tk)

    vmem_limit = int(min(_VMEM_LIMIT_CAP,
                         max(_vmem_need(tm_eff, tk, tn) + (4 << 20), 16 << 20)))

    cost = pl.CostEstimate(
        flops=2 * M_pad * K2 * N2,
        transcendentals=0,
        bytes_accessed=(M_pad * K2 * 2 + K2 * N2 * 2 + N2 * 4
                        + M_pad * N2 * jnp.dtype(out_dtype).itemsize),
    )

    out = pl.pallas_call(
        _complex_conv_mm_kernel,
        out_shape=jax.ShapeDtypeStruct((M_pad, N2), out_dtype),
        grid_spec=pltpu.PrefetchScalarGridSpec(
            num_scalar_prefetch=0,
            grid=grid,
            in_specs=[
                pl.BlockSpec((tm_eff, tk), lambda i, j, k: (i, k)),   # patches
                pl.BlockSpec((tk, tn), lambda i, j, k: (k, j)),       # weights
                pl.BlockSpec((1, tn), lambda i, j, k: (0, j)),        # bias
            ],
            out_specs=pl.BlockSpec((tm_eff, tn), lambda i, j, k: (i, j)),
            scratch_shapes=[pltpu.VMEM((tm_eff, tn), jnp.float32)],
        ),
        compiler_params=pltpu.CompilerParams(
            dimension_semantics=("parallel", "parallel", "arbitrary"),
            vmem_limit_bytes=vmem_limit,
        ),
        cost_estimate=cost,
    )(patches, w_block, b_cat)

    # [M, 2N] ([real | imag]) -> [B, Ho, Wo, 2, C_out] -> [B, C_out, Ho, Wo, 2]
    out = out[:M, :2 * N].reshape(B, H_out, W_out, 2, C_out)
    return out.transpose(0, 4, 1, 2, 3)


# ------------------------------ reference (plain JAX) ------------------------
def _conv_ref(x, w, b, stride, padding, dilation):
    out = jax.lax.conv_general_dilated(
        x, w, window_strides=(stride, stride),
        padding=[(padding, padding), (padding, padding)],
        rhs_dilation=(dilation, dilation),
        dimension_numbers=("NCHW", "OIHW", "NCHW"))
    return out + b[None, :, None, None]


def complex_conv2d_ref(x, w_re, b_re, w_im, b_im, *, stride, padding, dilation):
    x_re, x_im = x[..., 0], x[..., 1]
    real = (_conv_ref(x_re, w_re, b_re, stride, padding, dilation)
            - _conv_ref(x_im, w_im, b_im, stride, padding, dilation))
    imag = (_conv_ref(x_im, w_re, b_re, stride, padding, dilation)
            + _conv_ref(x_re, w_im, b_im, stride, padding, dilation))
    return jnp.stack((real, imag), axis=-1)


# ----------------------------------- main ------------------------------------
if __name__ == "__main__":
    # Module config (groups=1, bias=True).
    B, C_in, C_out = 2, 4, 8
    H = W = 16
    kh = kw = 3
    stride, padding, dilation = 1, 1, 1

    key = jax.random.PRNGKey(0)
    k_x, k_wr, k_br, k_wi, k_bi = jax.random.split(key, 5)

    # Deterministic "weights" (stand-in for nn.Conv2d's init; shapes match it).
    fan_in = C_in * kh * kw
    bound = 1.0 / jnp.sqrt(fan_in)
    x = jax.random.normal(k_x, (B, C_in, H, W, 2), dtype=jnp.float32)
    w_re = jax.random.uniform(k_wr, (C_out, C_in, kh, kw), jnp.float32, -bound, bound)
    b_re = jax.random.uniform(k_br, (C_out,), jnp.float32, -bound, bound)
    w_im = jax.random.uniform(k_wi, (C_out, C_in, kh, kw), jnp.float32, -bound, bound)
    b_im = jax.random.uniform(k_bi, (C_out,), jnp.float32, -bound, bound)

    out = complex_conv2d(x, w_re, b_re, w_im, b_im,
                         stride=stride, padding=padding, dilation=dilation)
    out = jax.block_until_ready(out)

    ref = complex_conv2d_ref(x, w_re, b_re, w_im, b_im,
                             stride=stride, padding=padding, dilation=dilation)
    ref = jax.block_until_ready(ref)

    assert out.shape == (B, C_out, H, W, 2), out.shape
    # bf16 inputs to the MXU (f32 accumulation) -> loosened tolerance vs f32 reference.
    max_err = float(jnp.max(jnp.abs(out - ref)))
    assert jnp.allclose(out, ref, atol=5e-2, rtol=5e-2), max_err

    print("KERNEL_OK")
</pallas_src>

<mosaic_0001>
module attributes {stable_mosaic.version = 11 : i64} {
  func.func @_complex_conv_mm_kernel(%arg0: i32, %arg1: i32, %arg2: i32, %arg3: memref<256x80xbf16, #tpu.memory_space<vmem>>, %arg4: memref<80x128xbf16, #tpu.memory_space<vmem>>, %arg5: memref<1x128xf32, #tpu.memory_space<vmem>>, %arg6: memref<256x128xf32, #tpu.memory_space<vmem>>, %arg7: memref<256x128xf32, #tpu.memory_space<vmem>>) attributes {dimension_semantics = [#tpu.dimension_semantics<parallel>, #tpu.dimension_semantics<parallel>, #tpu.dimension_semantics<arbitrary>], iteration_bounds = array<i64: 2, 1, 1>, scalar_prefetch = 0 : i64, scratch_operands = 1 : i64, tpu.core_type = #tpu.core_type<tc>, window_params = [{transform_indices = @transform_0, window_bounds = array<i64: 256, 80>}, {transform_indices = @transform_1, window_bounds = array<i64: 80, 128>}, {transform_indices = @transform_2, window_bounds = array<i64: 1, 128>}, {transform_indices = @transform_3, window_bounds = array<i64: 256, 128>}]} {
    %c0_i32 = arith.constant 0 : i32
    %0 = arith.cmpi eq, %arg2, %c0_i32 : i32
    %1 = arith.extui %0 : i1 to i32
    %c0_i32_0 = arith.constant 0 : i32
    %2 = arith.cmpi ne, %1, %c0_i32_0 : i32
    scf.if %2 {
      %cst_10 = arith.constant 0.000000e+00 : f32
      %12 = vector.broadcast %cst_10 : f32 to vector<256x128xf32>
      %c0_11 = arith.constant 0 : index
      %c0_12 = arith.constant 0 : index
      %13 = vector.load %arg7[%c0_11, %c0_12] : memref<256x128xf32, #tpu.memory_space<vmem>>, vector<256x128xf32>
      tpu.vector_store %arg7[%c0_11, %c0_12], %12 {strides = array<i32>} : memref<256x128xf32, #tpu.memory_space<vmem>>, vector<256x128xf32>,
    } else {
    }
    %c0 = arith.constant 0 : index
    %c0_1 = arith.constant 0 : index
    %3 = vector.load %arg7[%c0, %c0_1] : memref<256x128xf32, #tpu.memory_space<vmem>>, vector<256x128xf32>
    %c0_2 = arith.constant 0 : index
    %c0_3 = arith.constant 0 : index
    %4 = vector.load %arg3[%c0_2, %c0_3] : memref<256x80xbf16, #tpu.memory_space<vmem>>, vector<256x80xbf16>
    %c0_4 = arith.constant 0 : index
    %c0_5 = arith.constant 0 : index
    %5 = vector.load %arg4[%c0_4, %c0_5] : memref<80x128xbf16, #tpu.memory_space<vmem>>, vector<80x128xbf16>
    %cst = arith.constant dense<0.000000e+00> : vector<256x128xf32>
    %6 = tpu.matmul %4, %5, %cst {dimension_numbers = #tpu.dot_dimension_numbers<[1], [0], [0], [1], [0, 0, 1, 1], [], []>} : vector<256x80xbf16>, vector<80x128xbf16>, vector<256x128xf32> -> vector<256x128xf32>
    %7 = arith.addf %3, %6 : vector<256x128xf32>
    %c0_6 = arith.constant 0 : index
    %c0_7 = arith.constant 0 : index
    %8 = vector.load %arg7[%c0_6, %c0_7] : memref<256x128xf32, #tpu.memory_space<vmem>>, vector<256x128xf32>
    tpu.vector_store %arg7[%c0_6, %c0_7], %7 {strides = array<i32>} : memref<256x128xf32, #tpu.memory_space<vmem>>, vector<256x128xf32>,
    %c0_i32_8 = arith.constant 0 : i32
    %9 = arith.cmpi eq, %arg2, %c0_i32_8 : i32
    %10 = arith.extui %9 : i1 to i32
    %c0_i32_9 = arith.constant 0 : i32
    %11 = arith.cmpi ne, %10, %c0_i32_9 : i32
    scf.if %11 {
      %c0_10 = arith.constant 0 : index
      %c0_11 = arith.constant 0 : index
      %12 = vector.load %arg7[%c0_10, %c0_11] : memref<256x128xf32, #tpu.memory_space<vmem>>, vector<256x128xf32>
      %c0_12 = arith.constant 0 : index
      %c0_13 = arith.constant 0 : index
      %13 = vector.load %arg5[%c0_12, %c0_13] : memref<1x128xf32, #tpu.memory_space<vmem>>, vector<1x128xf32>
      %14 = vector.broadcast %13 : vector<1x128xf32> to vector<256x128xf32>
      %15 = arith.addf %12, %14 : vector<256x128xf32>
      %c0_14 = arith.constant 0 : index
      %c0_15 = arith.constant 0 : index
      %16 = vector.load %arg6[%c0_14, %c0_15] : memref<256x128xf32, #tpu.memory_space<vmem>>, vector<256x128xf32>
      tpu.vector_store %arg6[%c0_14, %c0_15], %15 {strides = array<i32>} : memref<256x128xf32, #tpu.memory_space<vmem>>, vector<256x128xf32>,
    } else {
    }
    return
  }
  func.func @transform_0(%arg0: i32, %arg1: i32, %arg2: i32) -> (i32, i32) {
    %c0_i32 = arith.constant 0 : i32
    return %arg0, %arg2 : i32, i32
  }
  func.func @transform_1(%arg0: i32, %arg1: i32, %arg2: i32) -> (i32, i32) {
    %c0_i32 = arith.constant 0 : i32
    return %arg2, %arg1 : i32, i32
  }
  func.func @transform_2(%arg0: i32, %arg1: i32, %arg2: i32) -> (i32, i32) {
    %c0_i32 = arith.constant 0 : i32
    %c0_i32_0 = arith.constant 0 : i32
    return %c0_i32, %arg1 : i32, i32
  }
  func.func @transform_3(%arg0: i32, %arg1: i32, %arg2: i32) -> (i32, i32) {
    %c0_i32 = arith.constant 0 : i32
    return %arg0, %arg1 : i32, i32
  }
}

</mosaic_0001>

<llo_original>
// kernel: complex_conv2d.1
$region0: #{complex_conv2d.1}
  #allocation0 [shape = 'u32[]', space=smem, size = 0x4, offset = 0x4, fixed_abs, tag = 'smem constant byte address 0x4 - core index']
  #allocation1 [shape = 'u32[144,128]{1,0:T(1,128)}', space=vmem, size = 0x12000, scoped, tag = 'internal scratch']
  #allocation2 [shape = 'f32[256,128]{1,0:T(8,128)}', space=vmem, size = 0x20000, scoped, tag = 'scratch operand']
  %s0 = inlined_call_operand.vmem [shape: bf16[512,80], index: 0, kind: input, shape index: {}]
  %s1 = inlined_call_operand.vmem [shape: bf16[80,128], index: 1, kind: input, shape index: {}]
  %s2 = inlined_call_operand.vmem [shape: f32[1,128], index: 2, kind: input, shape index: {}]
  %s3 = inlined_call_operand.vmem [shape: f32[512,128], index: 3, kind: output, shape index: {}]
  %s4 = sld [smem:[#allocation0]]
  $region53: #{complex_conv2d.1} parent=0
    _
  %s6 = ssub.s32 1, %s4
  %s7 = scalar_select 0, %s6, %s4
  loop: start=0, step=1, limit=4
  $region2: #{complex_conv2d.1} parent=0 // loop_pre_header
    _
  $region3: #{complex_conv2d.1} parent=0 // loop_header
    %s9 = sphi 0, %s13
    %p10 = scmp.ge.s32.totalorder %s9, 4
    %s16 = sphi 0, %s35
    %s17 = sphi 0, %s31
    %s18 = sphi 0, %s27
    %s19 = sphi 0, %s16
    %s20 = sphi 0, %s17
    %s21 = sphi 0, %s18
    %s22 = sphi 0, %s19
    %s23 = sphi 0, %s20
    %s24 = sphi 0, %s21
    %s40 = sphi 0, %s42
    %s43 = sphi 0, %s40
    %s44 = sphi 0, %s43
    %s60 = sphi 0, %s44
    %s68 = sphi 0, %s70
    %s71 = sphi 0, %s68
    %s72 = sphi 0, %s71
    %s88 = sphi 0, %s72
    %s94 = sphi 0, %s96
    %s97 = sphi 0, %s94
    %s98 = sphi 0, %s97
    %s114 = sphi 0, %s98
    %s122 = sphi 0, %s124
    %s125 = sphi 0, %s122
    %s126 = sphi 0, %s125
    %s142 = sphi 0, %s126
  $region4: #{complex_conv2d.1} parent=0 // loop_header_branch
    %12 = sbr.rel (%p10) target = $region8
  $region5: #{complex_conv2d.1} parent=0 // loop_body
    %s14 = ssub.s32 %s9, 1
    %s15 = ssub.s32 %s9, 2
    %s25 = sadd.s32 1, %s18
    %p26 = scmp.ge.s32.totalorder %s25, 1
    %s27 = scalar_select %p26, 0, %s25
    %s28 = sadd.s32 1, %s17
    %s29 = scalar_select %p26, %s28, %s17
    %p30 = scmp.ge.s32.totalorder %s29, 1
    %s31 = scalar_select %p30, 0, %s29
    %s32 = sadd.s32 1, %s16
    %s33 = scalar_select %p30, %s32, %s16
    %p34 = scmp.ge.s32.totalorder %s33, 2
    %s35 = scalar_select %p34, 0, %s33
    %s36 = ssub.s32 %s16, %s35
    %s37 = ssub.s32 %s18, %s27
    %s38 = sor.u32 %s36, %s37
    %p39 = scmp.eq.s32.totalorder %s38, 0
    %s41 = sadd.s32 %s40, 1
    %s42 = scalar_select %p39, %s40, %s41
    %p45 = pneg %p39
    %p46 = scmp.eq.s32.totalorder %s9, 1
    %p47 = por %p45, %p46
    %p48 = scmp.ne.s32.totalorder %s40, %s43
    %p49 = scmp.eq.s32.totalorder %s9, 0
    %p50 = por %p48, %p49
    %p51 = scmp.ne.s32.totalorder %s40, %s43
    %p52 = scmp.eq.s32.totalorder %s14, 1
    %p53 = por %p51, %p52
    %p54 = scmp.ne.s32.totalorder %s43, %s44
    %p55 = scmp.eq.s32.totalorder %s14, 0
    %p56 = por %p54, %p55
    %p57 = scmp.ne.s32.totalorder %s43, %s44
    %p58 = scmp.eq.s32.totalorder %s15, 1
    %p59 = por %p57, %p58
    %p61 = scmp.ne.s32.totalorder %s44, %s60
    %p62 = scmp.eq.s32.totalorder %s15, 0
    %p63 = por %p61, %p62
    %s64 = ssub.s32 %s18, %s27
    %s65 = ssub.s32 %s17, %s31
    %s66 = sor.u32 %s64, %s65
    %p67 = scmp.eq.s32.totalorder %s66, 0
    %s69 = sadd.s32 %s68, 1
    %s70 = scalar_select %p67, %s68, %s69
    %p73 = pneg %p67
    %p74 = scmp.eq.s32.totalorder %s9, 1
    %p75 = por %p73, %p74
    %p76 = scmp.ne.s32.totalorder %s68, %s71
    %p77 = scmp.eq.s32.totalorder %s9, 0
    %p78 = por %p76, %p77
    %p79 = scmp.ne.s32.totalorder %s68, %s71
    %p80 = scmp.eq.s32.totalorder %s14, 1
    %p81 = por %p79, %p80
    %p82 = scmp.ne.s32.totalorder %s71, %s72
    %p83 = scmp.eq.s32.totalorder %s14, 0
    %p84 = por %p82, %p83
    %p85 = scmp.ne.s32.totalorder %s71, %s72
    %p86 = scmp.eq.s32.totalorder %s15, 1
    %p87 = por %p85, %p86
    %p89 = scmp.ne.s32.totalorder %s72, %s88
    %p90 = scmp.eq.s32.totalorder %s15, 0
    %p91 = por %p89, %p90
    %s92 = ssub.s32 %s17, %s31
    %p93 = scmp.eq.s32.totalorder %s92, 0
    %s95 = sadd.s32 %s94, 1
    %s96 = scalar_select %p93, %s94, %s95
    %p99 = pneg %p93
    %p100 = scmp.eq.s32.totalorder %s9, 1
    %p101 = por %p99, %p100
    %p102 = scmp.ne.s32.totalorder %s94, %s97
    %p103 = scmp.eq.s32.totalorder %s9, 0
    %p104 = por %p102, %p103
    %p105 = scmp.ne.s32.totalorder %s94, %s97
    %p106 = scmp.eq.s32.totalorder %s14, 1
    %p107 = por %p105, %p106
    %p108 = scmp.ne.s32.totalorder %s97, %s98
    %p109 = scmp.eq.s32.totalorder %s14, 0
    %p110 = por %p108, %p109
    %p111 = scmp.ne.s32.totalorder %s97, %s98
    %p112 = scmp.eq.s32.totalorder %s15, 1
    %p113 = por %p111, %p112
    %p115 = scmp.ne.s32.totalorder %s98, %s114
    %p116 = scmp.eq.s32.totalorder %s15, 0
    %p117 = por %p115, %p116
    %s118 = ssub.s32 %s16, %s35
    %s119 = ssub.s32 %s17, %s31
    %s120 = sor.u32 %s118, %s119
    %p121 = scmp.eq.s32.totalorder %s120, 0
    %s123 = sadd.s32 %s122, 1
    %s124 = scalar_select %p121, %s122, %s123
    %p127 = pneg %p121
    %p128 = scmp.eq.s32.totalorder %s9, 1
    %p129 = por %p127, %p128
    %p130 = scmp.ne.s32.totalorder %s122, %s125
    %p131 = scmp.eq.s32.totalorder %s9, 0
    %p132 = por %p130, %p131
    %p133 = scmp.ne.s32.totalorder %s122, %s125
    %p134 = scmp.eq.s32.totalorder %s14, 1
    %p135 = por %p133, %p134
    %p136 = scmp.ne.s32.totalorder %s125, %s126
    %p137 = scmp.eq.s32.totalorder %s14, 0
    %p138 = por %p136, %p137
    %p139 = scmp.ne.s32.totalorder %s125, %s126
    %p140 = scmp.eq.s32.totalorder %s15, 1
    %p141 = por %p139, %p140
    %p143 = scmp.ne.s32.totalorder %s126, %s142
    %p144 = scmp.eq.s32.totalorder %s15, 0
    %p145 = por %p143, %p144
    %p146 = scmp.le.s32.totalorder 1, %s9
    %p147 = scmp.lt.s32.totalorder %s9, 3
    %p148 = pnand %p146, %p147
    %p149 = pneg %p148
    // Predicated region
    $region9: #{complex_conv2d.1} parent=5 // pred_check
      _
    $region10: #{complex_conv2d.1} parent=5 // pred_check_branch
      %151 = sbr.rel (%p148) target = $region12
    $region11: #{complex_conv2d.1} parent=5 // pred_region
      %s152 = ssub.s32 %s9, 1
      // Predicated region
      $region13: #{complex_conv2d.1} parent=11 // pred_check
        %p153 = pneg %p84
      $region14: #{complex_conv2d.1} parent=11 // pred_check_branch
        %155 = sbr.rel (%p153) target = $region16
      $region15: #{complex_conv2d.1} parent=11 // pred_region
        %s156 = smul.u32 10, %s21
        %p157 = scmp.lt.s32.totalorder %s156, 9
        %s158 = scalar_select %p157, %s156, 9
        %p159 = scmp.lt.s32.totalorder %s20, 0
        %s160 = scalar_select %p159, %s20, 0
        %s161 = sadd.s32 %s160, %s158
        %s162 = smul.addr %s161, 4
        %s163 = scalar_lea.vmem %s1, %s162
        %s164 = smul.u32 10, %s21
      $region16: #{complex_conv2d.1} parent=11 // pred_fallthru
        _
      // Predicated region
      $region17: #{complex_conv2d.1} parent=11 // pred_check
        %p165 = pneg %p110
      $region18: #{complex_conv2d.1} parent=11 // pred_check_branch
        %167 = sbr.rel (%p165) target = $region20
      $region19: #{complex_conv2d.1} parent=11 // pred_region
        %p168 = scmp.lt.s32.totalorder %s20, 0
        %s169 = scalar_select %p168, %s20, 0
        %s170 = scalar_lea.vmem %s2, %s169
      $region20: #{complex_conv2d.1} parent=11 // pred_fallthru
        _
    $region12: #{complex_conv2d.1} parent=5 // pred_fallthru
      _
    %p171 = scmp.lt.s32.totalorder %s9, 2
    // Predicated region
    $region21: #{complex_conv2d.1} parent=5 // pred_check
      %p172 = pneg %p171
    $region22: #{complex_conv2d.1} parent=5 // pred_check_branch
      %174 = sbr.rel (%p172) target = $region24
    $region23: #{complex_conv2d.1} parent=5 // pred_region
      // Predicated region
      $region25: #{complex_conv2d.1} parent=23 // pred_check
        %p175 = pneg %p50
      $region26: #{complex_conv2d.1} parent=23 // pred_check_branch
        %177 = sbr.rel (%p175) target = $region28
      $region27: #{complex_conv2d.1} parent=23 // pred_region
        %s178 = smul.u32 32, %s16
        %p179 = scmp.lt.s32.totalorder %s178, 63
        %s180 = scalar_select %p179, %s178, 63
        %p181 = scmp.lt.s32.totalorder %s18, 0
        %s182 = scalar_select %p181, %s18, 0
        %s183 = sadd.s32 %s182, %s180
        %s184 = smul.addr %s183, 4
        %s185 = scalar_lea.vmem %s0, %s184
        %s186 = smul.u32 32, %s16
      $region28: #{complex_conv2d.1} parent=23 // pred_fallthru
        _
    $region24: #{complex_conv2d.1} parent=5 // pred_fallthru
      _
    %p187 = scmp.le.s32.totalorder 1, %s9
    %p188 = scmp.lt.s32.totalorder %s9, 3
    %p189 = pnand %p187, %p188
    %p190 = pneg %p189
    // Predicated region
    $region29: #{complex_conv2d.1} parent=5 // pred_check
      _
    $region30: #{complex_conv2d.1} parent=5 // pred_check_branch
      %192 = sbr.rel (%p189) target = $region32
    $region31: #{complex_conv2d.1} parent=5 // pred_region
      %s193 = ssub.s32 %s9, 1
      %s194 = smul.u32 32, %s19
      %p195 = scmp.lt.s32.totalorder %s194, 63
      %s196 = scalar_select %p195, %s194, 63
      %p197 = scmp.lt.s32.totalorder %s21, 0
      %s198 = scalar_select %p197, %s21, 0
      %s199 = sadd.s32 %s198, %s196
      %s200 = smul.addr %s199, 4
      %s201 = scalar_lea.vmem %s0, %s200
      %p202 = pneg %p56
      %p203 = pneg %p53
      %s204 = smul.u32 10, %s21
      %p205 = scmp.lt.s32.totalorder %s204, 9
      %s206 = scalar_select %p205, %s204, 9
      %p207 = scmp.lt.s32.totalorder %s20, 0
      %s208 = scalar_select %p207, %s20, 0
      %s209 = sadd.s32 %s208, %s206
      %s210 = smul.addr %s209, 4
      %s211 = scalar_lea.vmem %s1, %s210
      %p212 = pneg %p84
      %p213 = pneg %p81
      %p214 = scmp.lt.s32.totalorder %s20, 0
      %s215 = scalar_select %p214, %s20, 0
      %s216 = scalar_lea.vmem %s2, %s215
      %p217 = pneg %p110
      %p218 = pneg %p107
      %p219 = pneg %p138
      %p220 = pneg %p135
      %s221 = smul.u32 32, %s19
      %p222 = scmp.lt.s32.totalorder %s221, 63
      %s223 = scalar_select %p222, %s221, 63
      %p224 = scmp.lt.s32.totalorder %s20, 0
      %s225 = scalar_select %p224, %s20, 0
      %s226 = sadd.s32 %s225, %s223
      %s227 = smul.addr %s226, 8
      %s228 = scalar_lea.vmem %s3, %s227
      %s229 = smul.u32 32, %s19
      %p230 = scmp.lt.s32.totalorder %s229, 63
      %s231 = scalar_select %p230, %s229, 63
      %p232 = scmp.lt.s32.totalorder %s21, 0
      %s233 = scalar_select %p232, %s21, 0
      %s234 = sadd.s32 %s233, %s231
      %s235 = smul.addr %s234, 4
      %s236 = scalar_lea.vmem %s0, %s235
      %s237 = smul.u32 32, %s19
      %s238 = smul.u32 10, %s21
      %p239 = scmp.lt.s32.totalorder %s238, 9
      %s240 = scalar_select %p239, %s238, 9
      %p241 = scmp.lt.s32.totalorder %s20, 0
      %s242 = scalar_select %p241, %s20, 0
      %s243 = sadd.s32 %s242, %s240
      %s244 = smul.addr %s243, 4
      %s245 = scalar_lea.vmem %s1, %s244
      %s246 = smul.u32 10, %s21
      %p247 = scmp.lt.s32.totalorder %s20, 0
      %s248 = scalar_select %p247, %s20, 0
      %s249 = scalar_lea.vmem %s2, %s248
      %s250 = smul.u32 32, %s19
      %p251 = scmp.lt.s32.totalorder %s250, 63
      %s252 = scalar_select %p251, %s250, 63
      %p253 = scmp.lt.s32.totalorder %s20, 0
      %s254 = scalar_select %p253, %s20, 0
      %s255 = sadd.s32 %s254, %s252
      %s256 = smul.addr %s255, 8
      %s257 = scalar_lea.vmem %s3, %s256
      %s258 = smul.u32 32, %s19
      %p260 = scmp.eq.s32.totalorder %s21, 0
      // Predicated region
      $region33: #{complex_conv2d.1} parent=31 // pred_check
        %p261 = pneg %p260
      $region34: #{complex_conv2d.1} parent=31 // pred_check_branch
        %263 = sbr.rel (%p261) target = $region36
      $region35: #{complex_conv2d.1} parent=31 // pred_region
        %264 = vst [vmem:[#allocation2] sm:$0xff] 0.0
        %265 = vst [vmem:[#allocation2 + $0x8] sm:$0xff] 0.0
        %266 = vst [vmem:[#allocation2 + $0x10] sm:$0xff] 0.0
        %267 = vst [vmem:[#allocation2 + $0x18] sm:$0xff] 0.0
        %268 = vst [vmem:[#allocation2 + $0x20] sm:$0xff] 0.0
        %269 = vst [vmem:[#allocation2 + $0x28] sm:$0xff] 0.0
        %270 = vst [vmem:[#allocation2 + $0x30] sm:$0xff] 0.0
        %271 = vst [vmem:[#allocation2 + $0x38] sm:$0xff] 0.0
        %272 = vst [vmem:[#allocation2 + $0x40] sm:$0xff] 0.0
        %273 = vst [vmem:[#allocation2 + $0x48] sm:$0xff] 0.0
        %274 = vst [vmem:[#allocation2 + $0x50] sm:$0xff] 0.0
        %275 = vst [vmem:[#allocation2 + $0x58] sm:$0xff] 0.0
        %276 = vst [vmem:[#allocation2 + $0x60] sm:$0xff] 0.0
        %277 = vst [vmem:[#allocation2 + $0x68] sm:$0xff] 0.0
        %278 = vst [vmem:[#allocation2 + $0x70] sm:$0xff] 0.0
        %279 = vst [vmem:[#allocation2 + $0x78] sm:$0xff] 0.0
        %280 = vst [vmem:[#allocation2 + $0x80] sm:$0xff] 0.0
        %281 = vst [vmem:[#allocation2 + $0x88] sm:$0xff] 0.0
        %282 = vst [vmem:[#allocation2 + $0x90] sm:$0xff] 0.0
        %283 = vst [vmem:[#allocation2 + $0x98] sm:$0xff] 0.0
        %284 = vst [vmem:[#allocation2 + $0xa0] sm:$0xff] 0.0
        %285 = vst [vmem:[#allocation2 + $0xa8] sm:$0xff] 0.0
        %286 = vst [vmem:[#allocation2 + $0xb0] sm:$0xff] 0.0
        %287 = vst [vmem:[#allocation2 + $0xb8] sm:$0xff] 0.0
        %288 = vst [vmem:[#allocation2 + $0xc0] sm:$0xff] 0.0
        %289 = vst [vmem:[#allocation2 + $0xc8] sm:$0xff] 0.0
        %290 = vst [vmem:[#allocation2 + $0xd0] sm:$0xff] 0.0
        %291 = vst [vmem:[#allocation2 + $0xd8] sm:$0xff] 0.0
        %292 = vst [vmem:[#allocation2 + $0xe0] sm:$0xff] 0.0
        %293 = vst [vmem:[#allocation2 + $0xe8] sm:$0xff] 0.0
        %294 = vst [vmem:[#allocation2 + $0xf0] sm:$0xff] 0.0
        %295 = vst [vmem:[#allocation2 + $0xf8] sm:$0xff] 0.0
      $region36: #{complex_conv2d.1} parent=31 // pred_fallthru
        _
      %v296 = vld [vmem:[#allocation2] sm:$0xff]
      %v297 = vld [vmem:[#allocation2 + $0x8] sm:$0xff]
      %v298 = vld [vmem:[#allocation2 + $0x10] sm:$0xff]
      %v299 = vld [vmem:[#allocation2 + $0x18] sm:$0xff]
      %v300 = vld [vmem:[#allocation2 + $0x20] sm:$0xff]
      %v301 = vld [vmem:[#allocation2 + $0x28] sm:$0xff]
      %v302 = vld [vmem:[#allocation2 + $0x30] sm:$0xff]
      %v303 = vld [vmem:[#allocation2 + $0x38] sm:$0xff]
      %v304 = vld [vmem:[#allocation2 + $0x40] sm:$0xff]
      %v305 = vld [vmem:[#allocation2 + $0x48] sm:$0xff]
      %v306 = vld [vmem:[#allocation2 + $0x50] sm:$0xff]
      %v307 = vld [vmem:[#allocation2 + $0x58] sm:$0xff]
      %v308 = vld [vmem:[#allocation2 + $0x60] sm:$0xff]
      %v309 = vld [vmem:[#allocation2 + $0x68] sm:$0xff]
      %v310 = vld [vmem:[#allocation2 + $0x70] sm:$0xff]
      %v311 = vld [vmem:[#allocation2 + $0x78] sm:$0xff]
      %v312 = vld [vmem:[#allocation2 + $0x80] sm:$0xff]
      %v313 = vld [vmem:[#allocation2 + $0x88] sm:$0xff]
      %v314 = vld [vmem:[#allocation2 + $0x90] sm:$0xff]
      %v315 = vld [vmem:[#allocation2 + $0x98] sm:$0xff]
      %v316 = vld [vmem:[#allocation2 + $0xa0] sm:$0xff]
      %v317 = vld [vmem:[#allocation2 + $0xa8] sm:$0xff]
      %v318 = vld [vmem:[#allocation2 + $0xb0] sm:$0xff]
      %v319 = vld [vmem:[#allocation2 + $0xb8] sm:$0xff]
      %v320 = vld [vmem:[#allocation2 + $0xc0] sm:$0xff]
      %v321 = vld [vmem:[#allocation2 + $0xc8] sm:$0xff]
      %v322 = vld [vmem:[#allocation2 + $0xd0] sm:$0xff]
      %v323 = vld [vmem:[#allocation2 + $0xd8] sm:$0xff]
      %v324 = vld [vmem:[#allocation2 + $0xe0] sm:$0xff]
      %v325 = vld [vmem:[#allocation2 + $0xe8] sm:$0xff]
      %v326 = vld [vmem:[#allocation2 + $0xf0] sm:$0xff]
      %v327 = vld [vmem:[#allocation2 + $0xf8] sm:$0xff]
      %v328 = vld [vmem:[%s236] sm:$0xf]
      %v329 = vld [vmem:[%s236 + $0x4] sm:$0xf]
      %v330 = vld [vmem:[%s236 + $0x8] sm:$0xf]
      %v331 = vld [vmem:[%s236 + $0xc] sm:$0xf]
      %v332 = vld [vmem:[%s236 + $0x10] sm:$0xf]
      %v333 = vld [vmem:[%s236 + $0x14] sm:$0xf]
      %v334 = vld [vmem:[%s236 + $0x18] sm:$0xf]
      %v335 = vld [vmem:[%s236 + $0x1c] sm:$0xf]
      %v336 = vld [vmem:[%s236 + $0x20] sm:$0xf]
      %v337 = vld [vmem:[%s236 + $0x24] sm:$0xf]
      %v338 = vld [vmem:[%s236 + $0x28] sm:$0xf]
      %v339 = vld [vmem:[%s236 + $0x2c] sm:$0xf]
      %v340 = vld [vmem:[%s236 + $0x30] sm:$0xf]
      %v341 = vld [vmem:[%s236 + $0x34] sm:$0xf]
      %v342 = vld [vmem:[%s236 + $0x38] sm:$0xf]
      %v343 = vld [vmem:[%s236 + $0x3c] sm:$0xf]
      %v344 = vld [vmem:[%s236 + $0x40] sm:$0xf]
      %v345 = vld [vmem:[%s236 + $0x44] sm:$0xf]
      %v346 = vld [vmem:[%s236 + $0x48] sm:$0xf]
      %v347 = vld [vmem:[%s236 + $0x4c] sm:$0xf]
      %v348 = vld [vmem:[%s236 + $0x50] sm:$0xf]
      %v349 = vld [vmem:[%s236 + $0x54] sm:$0xf]
      %v350 = vld [vmem:[%s236 + $0x58] sm:$0xf]
      %v351 = vld [vmem:[%s236 + $0x5c] sm:$0xf]
      %v352 = vld [vmem:[%s236 + $0x60] sm:$0xf]
      %v353 = vld [vmem:[%s236 + $0x64] sm:$0xf]
      %v354 = vld [vmem:[%s236 + $0x68] sm:$0xf]
      %v355 = vld [vmem:[%s236 + $0x6c] sm:$0xf]
      %v356 = vld [vmem:[%s236 + $0x70] sm:$0xf]
      %v357 = vld [vmem:[%s236 + $0x74] sm:$0xf]
      %v358 = vld [vmem:[%s236 + $0x78] sm:$0xf]
      %v359 = vld [vmem:[%s236 + $0x7c] sm:$0xf]
      %v360 = vld [vmem:[%s245] sm:$0xf]
      %v361 = vld [vmem:[%s245 + $0x4] sm:$0xf]
      %v362 = vld [vmem:[%s245 + $0x8] sm:$0xf]
      %v363 = vld [vmem:[%s245 + $0xc] sm:$0xf]
      %v364 = vld [vmem:[%s245 + $0x10] sm:$0xf]
      %v365 = vld [vmem:[%s245 + $0x14] sm:$0xf]
      %v366 = vld [vmem:[%s245 + $0x18] sm:$0xf]
      %v367 = vld [vmem:[%s245 + $0x1c] sm:$0xf]
      %v368 = vld [vmem:[%s245 + $0x20] sm:$0xf]
      %v369 = vld [vmem:[%s245 + $0x24] sm:$0xf]
      %v402 = vunpack.c.l.b16 %v328
      %v403 = vunpack.c.l.b16 %v329
      %v404 = vunpack.c.l.b16 %v330
      %v405 = vunpack.c.l.b16 %v331
      %v406 = vunpack.c.l.b16 %v332
      %v407 = vunpack.c.l.b16 %v333
      %v408 = vunpack.c.l.b16 %v334
      %v409 = vunpack.c.l.b16 %v335
      %v410 = vunpack.c.l.b16 %v336
      %v411 = vunpack.c.l.b16 %v337
      %v412 = vunpack.c.l.b16 %v338
      %v413 = vunpack.c.l.b16 %v339
      %v414 = vunpack.c.l.b16 %v340
      %v415 = vunpack.c.l.b16 %v341
      %v416 = vunpack.c.l.b16 %v342
      %v417 = vunpack.c.l.b16 %v343
      %v418 = vunpack.c.l.b16 %v344
      %v419 = vunpack.c.l.b16 %v345
      %v420 = vunpack.c.l.b16 %v346
      %v421 = vunpack.c.l.b16 %v347
      %v422 = vunpack.c.l.b16 %v348
      %v423 = vunpack.c.l.b16 %v349
      %v424 = vunpack.c.l.b16 %v350
      %v425 = vunpack.c.l.b16 %v351
      %v426 = vunpack.c.l.b16 %v352
      %v427 = vunpack.c.l.b16 %v353
      %v428 = vunpack.c.l.b16 %v354
      %v429 = vunpack.c.l.b16 %v355
      %v430 = vunpack.c.l.b16 %v356
      %v431 = vunpack.c.l.b16 %v357
      %v432 = vunpack.c.l.b16 %v358
      %v433 = vunpack.c.l.b16 %v359
      %v434 = vpack.c.b16 %v403, %v402
      %v435 = vpack.c.b16 %v405, %v404
      %v436 = vpack.c.b16 %v407, %v406
      %v437 = vpack.c.b16 %v409, %v408
      %v438 = vpack.c.b16 %v411, %v410
      %v439 = vpack.c.b16 %v413, %v412
      %v440 = vpack.c.b16 %v415, %v414
      %v441 = vpack.c.b16 %v417, %v416
      %v442 = vpack.c.b16 %v419, %v418
      %v443 = vpack.c.b16 %v421, %v420
      %v444 = vpack.c.b16 %v423, %v422
      %v445 = vpack.c.b16 %v425, %v424
      %v446 = vpack.c.b16 %v427, %v426
      %v447 = vpack.c.b16 %v429, %v428
      %v448 = vpack.c.b16 %v431, %v430
      %v449 = vpack.c.b16 %v433, %v432
      %v460 = vunpack.c.l.b16 %v360
      %v461 = vunpack.c.l.b16 %v361
      %v462 = vunpack.c.l.b16 %v362
      %v463 = vunpack.c.l.b16 %v363
      %v464 = vunpack.c.l.b16 %v364
      %v465 = vunpack.c.l.b16 %v365
      %v466 = vunpack.c.l.b16 %v366
      %v467 = vunpack.c.l.b16 %v367
      %v468 = vunpack.c.l.b16 %v368
      %v469 = vunpack.c.l.b16 %v369
      %v470 = vpack.c.b16 %v461, %v460
      %v471 = vpack.c.b16 %v463, %v462
      %v472 = vpack.c.b16 %v465, %v464
      %v473 = vpack.c.b16 %v467, %v466
      %v474 = vpack.c.b16 %v469, %v468
      %vm480 = vcmask 654336
      %v482 = vsel %vm480, %v434, 0
      %v485 = vsel %vm480, %v435, 0
      %v488 = vsel %vm480, %v436, 0
      %v491 = vsel %vm480, %v437, 0
      %v494 = vsel %vm480, %v438, 0
      %v497 = vsel %vm480, %v439, 0
      %v500 = vsel %vm480, %v440, 0
      %v503 = vsel %vm480, %v441, 0
      %v506 = vsel %vm480, %v442, 0
      %v509 = vsel %vm480, %v443, 0
      %v512 = vsel %vm480, %v444, 0
      %v515 = vsel %vm480, %v445, 0
      %v518 = vsel %vm480, %v446, 0
      %v521 = vsel %vm480, %v447, 0
      %v524 = vsel %vm480, %v448, 0
      %v527 = vsel %vm480, %v449, 0
      %529 = vmatprep.subr.bf16.mxu0 0
      %530 = vmatpush1.bf16.msra.mxu0 %v470
      %531 = vmatprep.subr.bf16.mxu0 0
      %532 = vmatpush1.bf16.msra.mxu0 %v471
      %533 = vmatprep.subr.bf16.mxu0 0
      %534 = vmatpush1.bf16.msra.mxu0 %v472
      %535 = vmatprep.subr.bf16.mxu0 0
      %536 = vmatpush1.bf16.msra.mxu0 %v473
      %537 = vmatprep.subr.bf16.mxu0 0
      %538 = vmatpush1.bf16.msra.mxu0 %v474
      %539 = vmatprep.subr.bf16.mxu0 0
      %540 = vmatpush1.bf16.msra.mxu0 0
      %541 = vmatprep.subr.bf16.mxu0 0
      %542 = vmatpush1.bf16.msra.mxu0 0
      %543 = vmatprep.subr.bf16.mxu0 0
      %544 = vmatpush1.bf16.msra.mxu0 0
      %545 = vmatprep.subr.bf16.mxu0 0
      %546 = vmatpush1.bf16.msra.mxu0 0
      %547 = vmatprep.subr.bf16.mxu0 0
      %548 = vmatpush1.bf16.msra.mxu0 0
      %549 = vmatprep.subr.bf16.mxu0 0
      %550 = vmatpush1.bf16.msra.mxu0 0
      %551 = vmatprep.subr.bf16.mxu0 0
      %552 = vmatpush1.bf16.msra.mxu0 0
      %553 = vmatprep.subr.bf16.mxu0 0
      %554 = vmatpush1.bf16.msra.mxu0 0
      %555 = vmatprep.subr.bf16.mxu0 0
      %556 = vmatpush1.bf16.msra.mxu0 0
      %557 = vmatprep.subr.bf16.mxu0 0
      %558 = vmatpush1.bf16.msra.mxu0 0
      %559 = vmatprep.subr.bf16.mxu0 0
      %560 = vmatpush1.bf16.msra.mxu0 0
      %561 = vmatprep.mubr.bf16.mxu0 0
      %562 = vmatmul.mubr.bf16.gmra.mrb[0].mxu0 %v482
      %v563 = vpop.f32.mrb[0].mxu0
      %v564 = vadd.f32 0.0, %v563
      %v565 = vpop.f32.mrb[0].mxu0
      %v566 = vpop.f32.mrb[0].mxu0
      %v567 = vadd.f32 0.0, %v566
      %v568 = vpop.f32.mrb[0].mxu0
      %569 = vmatprep.mubr.bf16.mxu0 0
      %570 = vmatmul.mubr.bf16.gmra.mrb[0].mxu0 %v485
      %v571 = vpop.f32.mrb[0].mxu0
      %v572 = vadd.f32 0.0, %v571
      %v573 = vpop.f32.mrb[0].mxu0
      %v574 = vpop.f32.mrb[0].mxu0
      %v575 = vadd.f32 0.0, %v574
      %v576 = vpop.f32.mrb[0].mxu0
      %577 = vmatprep.mubr.bf16.mxu0 0
      %578 = vmatmul.mubr.bf16.gmra.mrb[0].mxu0 %v488
      %v579 = vpop.f32.mrb[0].mxu0
      %v580 = vadd.f32 0.0, %v579
      %v581 = vpop.f32.mrb[0].mxu0
      %v582 = vpop.f32.mrb[0].mxu0
      %v583 = vadd.f32 0.0, %v582
      %v584 = vpop.f32.mrb[0].mxu0
      %585 = vmatprep.mubr.bf16.mxu0 0
      %586 = vmatmul.mubr.bf16.gmra.mrb[0].mxu0 %v491
      %v587 = vpop.f32.mrb[0].mxu0
      %v588 = vadd.f32 0.0, %v587
      %v589 = vpop.f32.mrb[0].mxu0
      %v590 = vpop.f32.mrb[0].mxu0
      %v591 = vadd.f32 0.0, %v590
      %v592 = vpop.f32.mrb[0].mxu0
      %593 = vmatprep.mubr.bf16.mxu0 0
      %594 = vmatmul.mubr.bf16.gmra.mrb[0].mxu0 %v494
      %v595 = vpop.f32.mrb[0].mxu0
      %v596 = vadd.f32 0.0, %v595
      %v597 = vpop.f32.mrb[0].mxu0
      %v598 = vpop.f32.mrb[0].mxu0
      %v599 = vadd.f32 0.0, %v598
      %v600 = vpop.f32.mrb[0].mxu0
      %601 = vmatprep.mubr.bf16.mxu0 0
      %602 = vmatmul.mubr.bf16.gmra.mrb[0].mxu0 %v497
      %v603 = vpop.f32.mrb[0].mxu0
      %v604 = vadd.f32 0.0, %v603
      %v605 = vpop.f32.mrb[0].mxu0
      %v606 = vpop.f32.mrb[0].mxu0
      %v607 = vadd.f32 0.0, %v606
      %v608 = vpop.f32.mrb[0].mxu0
      %609 = vmatprep.mubr.bf16.mxu0 0
      %610 = vmatmul.mubr.bf16.gmra.mrb[0].mxu0 %v500
      %v611 = vpop.f32.mrb[0].mxu0
      %v612 = vadd.f32 0.0, %v611
      %v613 = vpop.f32.mrb[0].mxu0
      %v614 = vpop.f32.mrb[0].mxu0
      %v615 = vadd.f32 0.0, %v614
      %v616 = vpop.f32.mrb[0].mxu0
      %617 = vmatprep.mubr.bf16.mxu0 0
      %618 = vmatmul.mubr.bf16.gmra.mrb[0].mxu0 %v503
      %v619 = vpop.f32.mrb[0].mxu0
      %v620 = vadd.f32 0.0, %v619
      %v621 = vpop.f32.mrb[0].mxu0
      %v622 = vpop.f32.mrb[0].mxu0
      %v623 = vadd.f32 0.0, %v622
      %v624 = vpop.f32.mrb[0].mxu0
      %625 = vmatprep.mubr.bf16.mxu0 0
      %626 = vmatmul.mubr.bf16.gmra.mrb[0].mxu0 %v506
      %v627 = vpop.f32.mrb[0].mxu0
      %v628 = vadd.f32 0.0, %v627
      %v629 = vpop.f32.mrb[0].mxu0
      %v630 = vpop.f32.mrb[0].mxu0
      %v631 = vadd.f32 0.0, %v630
      %v632 = vpop.f32.mrb[0].mxu0
      %633 = vmatprep.mubr.bf16.mxu0 0
      %634 = vmatmul.mubr.bf16.gmra.mrb[0].mxu0 %v509
      %v635 = vpop.f32.mrb[0].mxu0
      %v636 = vadd.f32 0.0, %v635
      %v637 = vpop.f32.mrb[0].mxu0
      %v638 = vpop.f32.mrb[0].mxu0
      %v639 = vadd.f32 0.0, %v638
      %v640 = vpop.f32.mrb[0].mxu0
      %641 = vmatprep.mubr.bf16.mxu0 0
      %642 = vmatmul.mubr.bf16.gmra.mrb[0].mxu0 %v512
      %v643 = vpop.f32.mrb[0].mxu0
      %v644 = vadd.f32 0.0, %v643
      %v645 = vpop.f32.mrb[0].mxu0
      %v646 = vpop.f32.mrb[0].mxu0
      %v647 = vadd.f32 0.0, %v646
      %v648 = vpop.f32.mrb[0].mxu0
      %649 = vmatprep.mubr.bf16.mxu0 0
      %650 = vmatmul.mubr.bf16.gmra.mrb[0].mxu0 %v515
      %v651 = vpop.f32.mrb[0].mxu0
      %v652 = vadd.f32 0.0, %v651
      %v653 = vpop.f32.mrb[0].mxu0
      %v654 = vpop.f32.mrb[0].mxu0
      %v655 = vadd.f32 0.0, %v654
      %v656 = vpop.f32.mrb[0].mxu0
      %657 = vmatprep.mubr.bf16.mxu0 0
      %658 = vmatmul.mubr.bf16.gmra.mrb[0].mxu0 %v518
      %v659 = vpop.f32.mrb[0].mxu0
      %v660 = vadd.f32 0.0, %v659
      %v661 = vpop.f32.mrb[0].mxu0
      %v662 = vpop.f32.mrb[0].mxu0
      %v663 = vadd.f32 0.0, %v662
      %v664 = vpop.f32.mrb[0].mxu0
      %665 = vmatprep.mubr.bf16.mxu0 0
      %666 = vmatmul.mubr.bf16.gmra.mrb[0].mxu0 %v521
      %v667 = vpop.f32.mrb[0].mxu0
      %v668 = vadd.f32 0.0, %v667
      %v669 = vpop.f32.mrb[0].mxu0
      %v670 = vpop.f32.mrb[0].mxu0
      %v671 = vadd.f32 0.0, %v670
      %v672 = vpop.f32.mrb[0].mxu0
      %673 = vmatprep.mubr.bf16.mxu0 0
      %674 = vmatmul.mubr.bf16.gmra.mrb[0].mxu0 %v524
      %v675 = vpop.f32.mrb[0].mxu0
      %v676 = vadd.f32 0.0, %v675
      %v677 = vpop.f32.mrb[0].mxu0
      %v678 = vpop.f32.mrb[0].mxu0
      %v679 = vadd.f32 0.0, %v678
      %v680 = vpop.f32.mrb[0].mxu0
      %681 = vmatprep.mubr.bf16.mxu0 0
      %682 = vmatmul.mubr.bf16.gmra.mrb[0].mxu0 %v527
      %v683 = vpop.f32.mrb[0].mxu0
      %v684 = vadd.f32 0.0, %v683
      %v685 = vpop.f32.mrb[0].mxu0
      %v686 = vpop.f32.mrb[0].mxu0
      %v687 = vadd.f32 0.0, %v686
      %v688 = vpop.f32.mrb[0].mxu0
      %689 = vdwg.mxu0
      %v690 = vadd.f32 %v296, %v564
      %v691 = vadd.f32 %v297, %v567
      %v692 = vadd.f32 %v298, %v572
      %v693 = vadd.f32 %v299, %v575
      %v694 = vadd.f32 %v300, %v580
      %v695 = vadd.f32 %v301, %v583
      %v696 = vadd.f32 %v302, %v588
      %v697 = vadd.f32 %v303, %v591
      %v698 = vadd.f32 %v304, %v596
      %v699 = vadd.f32 %v305, %v599
      %v700 = vadd.f32 %v306, %v604
      %v701 = vadd.f32 %v307, %v607
      %v702 = vadd.f32 %v308, %v612
      %v703 = vadd.f32 %v309, %v615
      %v704 = vadd.f32 %v310, %v620
      %v705 = vadd.f32 %v311, %v623
      %v706 = vadd.f32 %v312, %v628
      %v707 = vadd.f32 %v313, %v631
      %v708 = vadd.f32 %v314, %v636
      %v709 = vadd.f32 %v315, %v639
      %v710 = vadd.f32 %v316, %v644
      %v711 = vadd.f32 %v317, %v647
      %v712 = vadd.f32 %v318, %v652
      %v713 = vadd.f32 %v319, %v655
      %v714 = vadd.f32 %v320, %v660
      %v715 = vadd.f32 %v321, %v663
      %v716 = vadd.f32 %v322, %v668
      %v717 = vadd.f32 %v323, %v671
      %v718 = vadd.f32 %v324, %v676
      %v719 = vadd.f32 %v325, %v679
      %v720 = vadd.f32 %v326, %v684
      %v721 = vadd.f32 %v327, %v687
      %722 = vst [vmem:[#allocation2] sm:$0xff] %v690
      %723 = vst [vmem:[#allocation2 + $0x8] sm:$0xff] %v691
      %724 = vst [vmem:[#allocation2 + $0x10] sm:$0xff] %v692
      %725 = vst [vmem:[#allocation2 + $0x18] sm:$0xff] %v693
      %726 = vst [vmem:[#allocation2 + $0x20] sm:$0xff] %v694
      %727 = vst [vmem:[#allocation2 + $0x28] sm:$0xff] %v695
      %728 = vst [vmem:[#allocation2 + $0x30] sm:$0xff] %v696
      %729 = vst [vmem:[#allocation2 + $0x38] sm:$0xff] %v697
      %730 = vst [vmem:[#allocation2 + $0x40] sm:$0xff] %v698
      %731 = vst [vmem:[#allocation2 + $0x48] sm:$0xff] %v699
      %732 = vst [vmem:[#allocation2 + $0x50] sm:$0xff] %v700
      %733 = vst [vmem:[#allocation2 + $0x58] sm:$0xff] %v701
      %734 = vst [vmem:[#allocation2 + $0x60] sm:$0xff] %v702
      %735 = vst [vmem:[#allocation2 + $0x68] sm:$0xff] %v703
      %736 = vst [vmem:[#allocation2 + $0x70] sm:$0xff] %v704
      %737 = vst [vmem:[#allocation2 + $0x78] sm:$0xff] %v705
      %738 = vst [vmem:[#allocation2 + $0x80] sm:$0xff] %v706
      %739 = vst [vmem:[#allocation2 + $0x88] sm:$0xff] %v707
      %740 = vst [vmem:[#allocation2 + $0x90] sm:$0xff] %v708
      %741 = vst [vmem:[#allocation2 + $0x98] sm:$0xff] %v709
      %742 = vst [vmem:[#allocation2 + $0xa0] sm:$0xff] %v710
      %743 = vst [vmem:[#allocation2 + $0xa8] sm:$0xff] %v711
      %744 = vst [vmem:[#allocation2 + $0xb0] sm:$0xff] %v712
      %745 = vst [vmem:[#allocation2 + $0xb8] sm:$0xff] %v713
      %746 = vst [vmem:[#allocation2 + $0xc0] sm:$0xff] %v714
      %747 = vst [vmem:[#allocation2 + $0xc8] sm:$0xff] %v715
      %748 = vst [vmem:[#allocation2 + $0xd0] sm:$0xff] %v716
      %749 = vst [vmem:[#allocation2 + $0xd8] sm:$0xff] %v717
      %750 = vst [vmem:[#allocation2 + $0xe0] sm:$0xff] %v718
      %751 = vst [vmem:[#allocation2 + $0xe8] sm:$0xff] %v719
      %752 = vst [vmem:[#allocation2 + $0xf0] sm:$0xff] %v720
      %753 = vst [vmem:[#allocation2 + $0xf8] sm:$0xff] %v721
      // Predicated region
      $region37: #{complex_conv2d.1} parent=31 // pred_check
        %p754 = pneg %p260
      $region38: #{complex_conv2d.1} parent=31 // pred_check_branch
        %756 = sbr.rel (%p754) target = $region40
      $region39: #{complex_conv2d.1} parent=31 // pred_region
        %v757 = vld [vmem:[#allocation2] sm:$0xff]
        %v758 = vld [vmem:[#allocation2 + $0x8] sm:$0xff]
        %v759 = vld [vmem:[#allocation2 + $0x10] sm:$0xff]
        %v760 = vld [vmem:[#allocation2 + $0x18] sm:$0xff]
        %v761 = vld [vmem:[#allocation2 + $0x20] sm:$0xff]
        %v762 = vld [vmem:[#allocation2 + $0x28] sm:$0xff]
        %v763 = vld [vmem:[#allocation2 + $0x30] sm:$0xff]
        %v764 = vld [vmem:[#allocation2 + $0x38] sm:$0xff]
        %v765 = vld [vmem:[#allocation2 + $0x40] sm:$0xff]
        %v766 = vld [vmem:[#allocation2 + $0x48] sm:$0xff]
        %v767 = vld [vmem:[#allocation2 + $0x50] sm:$0xff]
        %v768 = vld [vmem:[#allocation2 + $0x58] sm:$0xff]
        %v769 = vld [vmem:[#allocation2 + $0x60] sm:$0xff]
        %v770 = vld [vmem:[#allocation2 + $0x68] sm:$0xff]
        %v771 = vld [vmem:[#allocation2 + $0x70] sm:$0xff]
        %v772 = vld [vmem:[#allocation2 + $0x78] sm:$0xff]
        %v773 = vld [vmem:[#allocation2 + $0x80] sm:$0xff]
        %v774 = vld [vmem:[#allocation2 + $0x88] sm:$0xff]
        %v775 = vld [vmem:[#allocation2 + $0x90] sm:$0xff]
        %v776 = vld [vmem:[#allocation2 + $0x98] sm:$0xff]
        %v777 = vld [vmem:[#allocation2 + $0xa0] sm:$0xff]
        %v778 = vld [vmem:[#allocation2 + $0xa8] sm:$0xff]
        %v779 = vld [vmem:[#allocation2 + $0xb0] sm:$0xff]
        %v780 = vld [vmem:[#allocation2 + $0xb8] sm:$0xff]
        %v781 = vld [vmem:[#allocation2 + $0xc0] sm:$0xff]
        %v782 = vld [vmem:[#allocation2 + $0xc8] sm:$0xff]
        %v783 = vld [vmem:[#allocation2 + $0xd0] sm:$0xff]
        %v784 = vld [vmem:[#allocation2 + $0xd8] sm:$0xff]
        %v785 = vld [vmem:[#allocation2 + $0xe0] sm:$0xff]
        %v786 = vld [vmem:[#allocation2 + $0xe8] sm:$0xff]
        %v787 = vld [vmem:[#allocation2 + $0xf0] sm:$0xff]
        %v788 = vld [vmem:[#allocation2 + $0xf8] sm:$0xff]
        %v789 = vld [vmem:[%s249] sm:$0x1]
        %v791 = vlaneseq
        %v792 = vshrl.u32 %v791, 7
        %v793 = vsub.s32 0, %v792
        %v794 = vrot.slane %v789, %v793
        %v796 = vadd.f32 %v757, %v794
        %v797 = vadd.f32 %v758, %v794
        %v798 = vadd.f32 %v759, %v794
        %v799 = vadd.f32 %v760, %v794
        %v800 = vadd.f32 %v761, %v794
        %v801 = vadd.f32 %v762, %v794
        %v802 = vadd.f32 %v763, %v794
        %v803 = vadd.f32 %v764, %v794
        %v804 = vadd.f32 %v765, %v794
        %v805 = vadd.f32 %v766, %v794
        %v806 = vadd.f32 %v767, %v794
        %v807 = vadd.f32 %v768, %v794
        %v808 = vadd.f32 %v769, %v794
        %v809 = vadd.f32 %v770, %v794
        %v810 = vadd.f32 %v771, %v794
        %v811 = vadd.f32 %v772, %v794
        %v812 = vadd.f32 %v773, %v794
        %v813 = vadd.f32 %v774, %v794
        %v814 = vadd.f32 %v775, %v794
        %v815 = vadd.f32 %v776, %v794
        %v816 = vadd.f32 %v777, %v794
        %v817 = vadd.f32 %v778, %v794
        %v818 = vadd.f32 %v779, %v794
        %v819 = vadd.f32 %v780, %v794
        %v820 = vadd.f32 %v781, %v794
        %v821 = vadd.f32 %v782, %v794
        %v822 = vadd.f32 %v783, %v794
        %v823 = vadd.f32 %v784, %v794
        %v824 = vadd.f32 %v785, %v794
        %v825 = vadd.f32 %v786, %v794
        %v826 = vadd.f32 %v787, %v794
        %v827 = vadd.f32 %v788, %v794
        %828 = vst [vmem:[%s257] sm:$0xff] %v796
        %829 = vst [vmem:[%s257 + $0x8] sm:$0xff] %v797
        %830 = vst [vmem:[%s257 + $0x10] sm:$0xff] %v798
        %831 = vst [vmem:[%s257 + $0x18] sm:$0xff] %v799
        %832 = vst [vmem:[%s257 + $0x20] sm:$0xff] %v800
        %833 = vst [vmem:[%s257 + $0x28] sm:$0xff] %v801
        %834 = vst [vmem:[%s257 + $0x30] sm:$0xff] %v802
        %835 = vst [vmem:[%s257 + $0x38] sm:$0xff] %v803
        %836 = vst [vmem:[%s257 + $0x40] sm:$0xff] %v804
        %837 = vst [vmem:[%s257 + $0x48] sm:$0xff] %v805
        %838 = vst [vmem:[%s257 + $0x50] sm:$0xff] %v806
        %839 = vst [vmem:[%s257 + $0x58] sm:$0xff] %v807
        %840 = vst [vmem:[%s257 + $0x60] sm:$0xff] %v808
        %841 = vst [vmem:[%s257 + $0x68] sm:$0xff] %v809
        %842 = vst [vmem:[%s257 + $0x70] sm:$0xff] %v810
        %843 = vst [vmem:[%s257 + $0x78] sm:$0xff] %v811
        %844 = vst [vmem:[%s257 + $0x80] sm:$0xff] %v812
        %845 = vst [vmem:[%s257 + $0x88] sm:$0xff] %v813
        %846 = vst [vmem:[%s257 + $0x90] sm:$0xff] %v814
        %847 = vst [vmem:[%s257 + $0x98] sm:$0xff] %v815
        %848 = vst [vmem:[%s257 + $0xa0] sm:$0xff] %v816
        %849 = vst [vmem:[%s257 + $0xa8] sm:$0xff] %v817
        %850 = vst [vmem:[%s257 + $0xb0] sm:$0xff] %v818
        %851 = vst [vmem:[%s257 + $0xb8] sm:$0xff] %v819
        %852 = vst [vmem:[%s257 + $0xc0] sm:$0xff] %v820
        %853 = vst [vmem:[%s257 + $0xc8] sm:$0xff] %v821
        %854 = vst [vmem:[%s257 + $0xd0] sm:$0xff] %v822
        %855 = vst [vmem:[%s257 + $0xd8] sm:$0xff] %v823
        %856 = vst [vmem:[%s257 + $0xe0] sm:$0xff] %v824
        %857 = vst [vmem:[%s257 + $0xe8] sm:$0xff] %v825
        %858 = vst [vmem:[%s257 + $0xf0] sm:$0xff] %v826
        %859 = vst [vmem:[%s257 + $0xf8] sm:$0xff] %v827
      $region40: #{complex_conv2d.1} parent=31 // pred_fallthru
        _
      %s860 = smul.u32 32, %s19
      %p861 = scmp.lt.s32.totalorder %s860, 63
      %s862 = scalar_select %p861, %s860, 63
      %p863 = scmp.lt.s32.totalorder %s20, 0
      %s864 = scalar_select %p863, %s20, 0
      %s865 = sadd.s32 %s864, %s862
      %s866 = smul.addr %s865, 8
      %s867 = scalar_lea.vmem %s3, %s866
      // Predicated region
      $region41: #{complex_conv2d.1} parent=31 // pred_check
        %p868 = pneg %p135
      $region42: #{complex_conv2d.1} parent=31 // pred_check_branch
        %870 = sbr.rel (%p868) target = $region44
      $region43: #{complex_conv2d.1} parent=31 // pred_region
        %s871 = smul.u32 32, %s19
      $region44: #{complex_conv2d.1} parent=31 // pred_fallthru
        _
    $region32: #{complex_conv2d.1} parent=5 // pred_fallthru
      _
    %p872 = scmp.le.s32.totalorder 2, %s9
    // Predicated region
    $region45: #{complex_conv2d.1} parent=5 // pred_check
      %p873 = pneg %p872
    $region46: #{complex_conv2d.1} parent=5 // pred_check_branch
      %875 = sbr.rel (%p873) target = $region48
    $region47: #{complex_conv2d.1} parent=5 // pred_region
      %s876 = ssub.s32 %s9, 2
      // Predicated region
      $region49: #{complex_conv2d.1} parent=47 // pred_check
        %p877 = pneg %p141
      $region50: #{complex_conv2d.1} parent=47 // pred_check_branch
        %879 = sbr.rel (%p877) target = $region52
      $region51: #{complex_conv2d.1} parent=47 // pred_region
        %s880 = smul.u32 32, %s22
        %p881 = scmp.lt.s32.totalorder %s880, 63
        %s882 = scalar_select %p881, %s880, 63
        %p883 = scmp.lt.s32.totalorder %s23, 0
        %s884 = scalar_select %p883, %s23, 0
        %s885 = sadd.s32 %s884, %s882
        %s886 = smul.addr %s885, 8
        %s887 = scalar_lea.vmem %s3, %s886
      $region52: #{complex_conv2d.1} parent=47 // pred_fallthru
        _
    $region48: #{complex_conv2d.1} parent=5 // pred_fallthru
      _
  $region6: #{complex_conv2d.1} parent=0 // loop_footer
    %s13 = sadd.s32 1, %s9
  $region7: #{complex_conv2d.1} parent=0 // loop_footer_branch
    %8 = sbr.rel target = $region3
  $region8: #{complex_conv2d.1} parent=0 // loop_exit
    _

</llo_original>
